<compile_context>
chip_gen: v7x
topology: tpu7x:2x2x1
jax: 0.10.0
libtpu: 0.0.40
codegen_flags: <defaults>
</compile_context>

<pallas_src>
import jax
import jax.numpy as jnp
from jax.experimental import pallas as pl
from jax.experimental.pallas import tpu as pltpu


_COLS = 128            # full lane width -> every store is an unmasked vst
_MAX_TILE_ROWS = 2048  # 2048 x 128 x 4 B = 1 MiB/tile (f32); 6 live buffers ~ 6 MiB


def _sub_kernel(pred_ref, true_ref, out_ref):
    # Pure VPU elementwise subtraction on a lane-dense (tile_rows, 128) tile.
    out_ref[...] = pred_ref[...] - true_ref[...]


def _row_granule(itemsize):
    # Native sublane packing: 8 rows for 4-byte, 16 for 2-byte, 32 for 1-byte
    # dtypes, so padded tiles always match the hardware tiling.
    return max(8, 32 // max(int(itemsize), 1))


@jax.jit
def loss_distance(pred, true):
    """Elementwise pred - true via a tiled Pallas TPU kernel (LossDistance.forward)."""
    assert pred.shape == true.shape and pred.dtype == true.dtype
    orig_shape = pred.shape
    dtype = pred.dtype
    itemsize = jnp.dtype(dtype).itemsize

    total = 1
    for d in orig_shape:
        total *= int(d)

    # Pad the flattened length up to a whole number of native row-granules so
    # the kernel always sees full-width, properly tiled (rows, 128) slabs.
    granule = _row_granule(itemsize) * _COLS
    padded = pl.cdiv(max(total, 1), granule) * granule
    rows = padded // _COLS

    pred_flat = pred.reshape(total)
    true_flat = true.reshape(total)
    if padded != total:
        pad = padded - total
        pred_flat = jnp.pad(pred_flat, (0, pad))
        true_flat = jnp.pad(true_flat, (0, pad))

    pred2d = pred_flat.reshape(rows, _COLS)
    true2d = true_flat.reshape(rows, _COLS)

    tile_rows = min(_MAX_TILE_ROWS, rows)
    grid = (pl.cdiv(rows, tile_rows),)

    tile_bytes = tile_rows * _COLS * itemsize
    # 3 arrays x 2 pipeline buffers per array, plus a few MiB of headroom,
    # capped well under every generation's physical VMEM (64 MiB on v7x).
    vmem_bytes = int(min(3 * 2 * tile_bytes + (4 << 20), 32 << 20))

    spec = pl.BlockSpec((tile_rows, _COLS), lambda i: (i, 0))

    # TODO(synk): if profiling on v7x shows exposed input DMA at these tile
    # sizes, sweep pipeline_mode=pl.Buffered(3) on the two input BlockSpecs.
    out2d = pl.pallas_call(
        _sub_kernel,
        out_shape=jax.ShapeDtypeStruct((rows, _COLS), dtype),
        grid=grid,
        in_specs=[spec, spec],
        out_specs=spec,
        compiler_params=pltpu.CompilerParams(
            dimension_semantics=("parallel",),
            vmem_limit_bytes=vmem_bytes,
        ),
        cost_estimate=pl.CostEstimate(
            flops=padded,
            transcendentals=0,
            bytes_accessed=3 * padded * itemsize,
        ),
    )(pred2d, true2d)

    out_flat = out2d.reshape(padded)
    if padded != total:
        out_flat = out_flat[:total]
    return out_flat.reshape(orig_shape)


if __name__ == "__main__":
    key = jax.random.PRNGKey(0)
    k_pred, k_true = jax.random.split(key)

    # NCHW, small shapes consistent with a typical dense prediction loss input.
    pred = jax.random.normal(k_pred, (2, 4, 16, 16), dtype=jnp.float32)
    true = jax.random.normal(k_true, (2, 4, 16, 16), dtype=jnp.float32)

    out = jax.block_until_ready(loss_distance(pred, true))

    # Correctness check against the reference semantics (pred - true).
    ref = pred - true
    assert out.shape == ref.shape and out.dtype == ref.dtype
    assert jnp.allclose(out, ref, atol=1e-6, rtol=1e-6)

    print("KERNEL_OK")
</pallas_src>

<mosaic_0001>
module attributes {stable_mosaic.version = 11 : i64} {
  func.func @_sub_kernel(%arg0: i32, %arg1: memref<16x128xf32, #tpu.memory_space<vmem>>, %arg2: memref<16x128xf32, #tpu.memory_space<vmem>>, %arg3: memref<16x128xf32, #tpu.memory_space<vmem>>) attributes {dimension_semantics = [#tpu.dimension_semantics<parallel>], iteration_bounds = array<i64: 1>, scalar_prefetch = 0 : i64, scratch_operands = 0 : i64, tpu.core_type = #tpu.core_type<tc>, window_params = [{transform_indices = @transform_0, window_bounds = array<i64: 16, 128>}, {transform_indices = @transform_1, window_bounds = array<i64: 16, 128>}, {transform_indices = @transform_2, window_bounds = array<i64: 16, 128>}]} {
    %c0 = arith.constant 0 : index
    %c0_0 = arith.constant 0 : index
    %0 = vector.load %arg1[%c0, %c0_0] : memref<16x128xf32, #tpu.memory_space<vmem>>, vector<16x128xf32>
    %c0_1 = arith.constant 0 : index
    %c0_2 = arith.constant 0 : index
    %1 = vector.load %arg2[%c0_1, %c0_2] : memref<16x128xf32, #tpu.memory_space<vmem>>, vector<16x128xf32>
    %2 = arith.subf %0, %1 : vector<16x128xf32>
    %c0_3 = arith.constant 0 : index
    %c0_4 = arith.constant 0 : index
    %3 = vector.load %arg3[%c0_3, %c0_4] : memref<16x128xf32, #tpu.memory_space<vmem>>, vector<16x128xf32>
    tpu.vector_store %arg3[%c0_3, %c0_4], %2 {strides = array<i32>} : memref<16x128xf32, #tpu.memory_space<vmem>>, vector<16x128xf32>,
    return
  }
  func.func @transform_0(%arg0: i32) -> (i32, i32) {
    %c0_i32 = arith.constant 0 : i32
    %c0_i32_0 = arith.constant 0 : i32
    return %arg0, %c0_i32 : i32, i32
  }
  func.func @transform_1(%arg0: i32) -> (i32, i32) {
    %c0_i32 = arith.constant 0 : i32
    %c0_i32_0 = arith.constant 0 : i32
    return %arg0, %c0_i32 : i32, i32
  }
  func.func @transform_2(%arg0: i32) -> (i32, i32) {
    %c0_i32 = arith.constant 0 : i32
    %c0_i32_0 = arith.constant 0 : i32
    return %arg0, %c0_i32 : i32, i32
  }
}

</mosaic_0001>

<llo_original>
// kernel: loss_distance.1
$region0: #{loss_distance.1}
  #allocation0 [shape = 'u32[]', space=smem, size = 0x4, offset = 0x4, fixed_abs, tag = 'smem constant byte address 0x4 - core index']
  #allocation1 [shape = 'u32[144,128]{1,0:T(1,128)}', space=vmem, size = 0x12000, scoped, tag = 'internal scratch']
  %s0 = inlined_call_operand.vmem [shape: f32[16,128], index: 0, kind: input, shape index: {}]
  %s1 = inlined_call_operand.vmem [shape: f32[16,128], index: 1, kind: input, shape index: {}]
  %s2 = inlined_call_operand.vmem [shape: f32[16,128], index: 2, kind: output, shape index: {}]
  %s3 = sld [smem:[#allocation0]]
  $region18: #{loss_distance.1} parent=0
    _
  %s5 = ssub.s32 1, %s3
  %s6 = scalar_select 0, %s5, %s3
  // Predicated region
  $region2: #{loss_distance.1} parent=0 // pred_check
    _
  $region3: #{loss_distance.1} parent=0 // pred_check_branch
    %8 = sbr.rel (0) target = $region5
  $region4: #{loss_distance.1} parent=0 // pred_region
    _
  $region5: #{loss_distance.1} parent=0 // pred_fallthru
    _
  // Predicated region
  $region6: #{loss_distance.1} parent=0 // pred_check
    _
  $region7: #{loss_distance.1} parent=0 // pred_check_branch
    %10 = sbr.rel (0) target = $region9
  $region8: #{loss_distance.1} parent=0 // pred_region
    _
  $region9: #{loss_distance.1} parent=0 // pred_fallthru
    _
  %v11 = vld [vmem:[%s0] sm:$0xff]
  %v12 = vld [vmem:[%s0 + $0x8] sm:$0xff]
  %v13 = vld [vmem:[%s1] sm:$0xff]
  %v14 = vld [vmem:[%s1 + $0x8] sm:$0xff]
  %v15 = vsub.f32 %v11, %v13
  %v16 = vsub.f32 %v12, %v14
  %17 = vst [vmem:[%s2] sm:$0xff] %v15
  %18 = vst [vmem:[%s2 + $0x8] sm:$0xff] %v16
  // Predicated region
  $region10: #{loss_distance.1} parent=0 // pred_check
    _
  $region11: #{loss_distance.1} parent=0 // pred_check_branch
    %20 = sbr.rel (0) target = $region13
  $region12: #{loss_distance.1} parent=0 // pred_region
    _
  $region13: #{loss_distance.1} parent=0 // pred_fallthru
    _
  // Predicated region
  $region14: #{loss_distance.1} parent=0 // pred_check
    _
  $region15: #{loss_distance.1} parent=0 // pred_check_branch
    %22 = sbr.rel (0) target = $region17
  $region16: #{loss_distance.1} parent=0 // pred_region
    _
  $region17: #{loss_distance.1} parent=0 // pred_fallthru
    _

</llo_original>
